<compile_context>
chip_gen: v5e
topology: v5e:2x2
jax: 0.10.0
libtpu: 0.0.40
codegen_flags: <defaults>
</compile_context>

<pallas_src>
import functools

import jax
import jax.numpy as jnp
from jax import lax
from jax.experimental import pallas as pl
from jax.experimental.pallas import tpu as pltpu

EPS = 1e-5           # PyTorch BatchNorm1d default eps
MAX_TILE_M = 1024    # row tile over the point axis (fits default scoped VMEM
                     # on v5e/v6e/v7x; ~4 MiB widest intermediate per tile)
PAD_CIN = 8          # pad the 3-channel input to 8 lanes (sublane friendly)


def _round_up(x, m):
    return (x + m - 1) // m * m


# ----------------------------------------------------------------------------
# Fused point-MLP (c1 -> c2 -> c3, each + bias + ReLU) + global max pool
# ----------------------------------------------------------------------------
def _point_mlp_max_kernel(x_ref, w1, b1, w2, b2, w3, b3, o_ref, *,
                          n_valid, tile):
    t = pl.program_id(1)

    x = x_ref[0]                                               # (TILE, 8)
    h = jnp.dot(x, w1[...], preferred_element_type=jnp.float32) + b1[...]
    h = jnp.maximum(h, 0.0)                                    # (TILE, 64)
    h = jnp.dot(h, w2[...], preferred_element_type=jnp.float32) + b2[...]
    h = jnp.maximum(h, 0.0)                                    # (TILE, 128)
    h = jnp.dot(h, w3[...], preferred_element_type=jnp.float32) + b3[...]
    h = jnp.maximum(h, 0.0)                                    # (TILE, 1024)

    if n_valid % tile != 0:
        # mask rows that are pure padding in the (only) partial tile
        row = t * tile + lax.broadcasted_iota(jnp.int32, (tile, 1), 0)
        h = jnp.where(row < n_valid, h, -jnp.inf)

    tile_max = jnp.max(h, axis=0, keepdims=True)               # (1, 1024)

    @pl.when(t == 0)
    def _init():
        o_ref[...] = jnp.full(o_ref.shape, -jnp.inf, o_ref.dtype)

    o_ref[...] = jnp.maximum(o_ref[...], tile_max[None])


def point_mlp_maxpool(x_bnc, stage):
    """x_bnc: (B, N, 3) -> (B, 1024) = max_n relu(mlp(point_n))."""
    B, N, C = x_bnc.shape
    x_pad = jnp.pad(x_bnc, ((0, 0), (0, 0), (0, PAD_CIN - C)))   # channel 3->8

    tile = min(MAX_TILE_M, _round_up(N, 8))
    n_pad = _round_up(N, tile)
    if n_pad != N:
        x_pad = jnp.pad(x_pad, ((0, 0), (0, n_pad - N), (0, 0)))

    w1, b1 = stage["c1"]      # (8, 64) padded
    w2, b2 = stage["c2"]      # (64, 128)
    w3, b3 = stage["c3"]      # (128, 1024)

    out = pl.pallas_call(
        functools.partial(_point_mlp_max_kernel, n_valid=N, tile=tile),
        out_shape=jax.ShapeDtypeStruct((B, 1, 1024), jnp.float32),
        grid=(B, n_pad // tile),
        in_specs=[
            pl.BlockSpec((1, tile, PAD_CIN), lambda b, t: (b, t, 0)),
            pl.BlockSpec((PAD_CIN, 64), lambda b, t: (0, 0)),
            pl.BlockSpec((1, 64), lambda b, t: (0, 0)),
            pl.BlockSpec((64, 128), lambda b, t: (0, 0)),
            pl.BlockSpec((1, 128), lambda b, t: (0, 0)),
            pl.BlockSpec((128, 1024), lambda b, t: (0, 0)),
            pl.BlockSpec((1, 1024), lambda b, t: (0, 0)),
        ],
        out_specs=pl.BlockSpec((1, 1, 1024), lambda b, t: (b, 0, 0)),
        compiler_params=pltpu.CompilerParams(
            dimension_semantics=("parallel", "arbitrary"),
            vmem_limit_bytes=32 * 1024 * 1024,
        ),
    )(x_pad, w1, b1.reshape(1, -1), w2, b2.reshape(1, -1),
      w3, b3.reshape(1, -1))
    return out.reshape(B, 1024)


# ----------------------------------------------------------------------------
# Fused 3-layer FC head (used for both the TNet head and the classifier head)
# ----------------------------------------------------------------------------
def _fc3_kernel(x_ref, w1, b1, w2, b2, w3, b3, o_ref, *,
                add_eye, log_softmax_out):
    h = jnp.dot(x_ref[...], w1[...], preferred_element_type=jnp.float32) + b1[...]
    h = jnp.maximum(h, 0.0)
    h = jnp.dot(h, w2[...], preferred_element_type=jnp.float32) + b2[...]
    h = jnp.maximum(h, 0.0)
    y = jnp.dot(h, w3[...], preferred_element_type=jnp.float32) + b3[...]

    if add_eye:
        # flattened 3x3 identity: columns 0, 4, 8 of the 9 outputs
        col = lax.broadcasted_iota(jnp.int32, y.shape, 1)
        y = y + jnp.where(col % 4 == 0, jnp.float32(1.0), jnp.float32(0.0))

    if log_softmax_out:
        m = jnp.max(y, axis=-1, keepdims=True)
        y = y - m
        y = y - jnp.log(jnp.sum(jnp.exp(y), axis=-1, keepdims=True))

    o_ref[...] = y.astype(o_ref.dtype)


def fused_fc_head(x, p1, p2, p3, *, add_eye=False, log_softmax_out=False):
    """x: (B, Cin); three (w, b) layer params; relu after layers 1 and 2."""
    B, Cin = x.shape
    w1, b1 = p1
    w2, b2 = p2
    w3, b3 = p3
    C1, C2, C3 = w1.shape[1], w2.shape[1], w3.shape[1]
    return pl.pallas_call(
        functools.partial(_fc3_kernel, add_eye=add_eye,
                          log_softmax_out=log_softmax_out),
        out_shape=jax.ShapeDtypeStruct((B, C3), jnp.float32),
        grid=(1,),
        in_specs=[
            pl.BlockSpec((B, Cin), lambda i: (0, 0)),
            pl.BlockSpec((Cin, C1), lambda i: (0, 0)),
            pl.BlockSpec((1, C1), lambda i: (0, 0)),
            pl.BlockSpec((C1, C2), lambda i: (0, 0)),
            pl.BlockSpec((1, C2), lambda i: (0, 0)),
            pl.BlockSpec((C2, C3), lambda i: (0, 0)),
            pl.BlockSpec((1, C3), lambda i: (0, 0)),
        ],
        out_specs=pl.BlockSpec((B, C3), lambda i: (0, 0)),
        compiler_params=pltpu.CompilerParams(
            vmem_limit_bytes=32 * 1024 * 1024),
    )(x, w1, b1.reshape(1, -1), w2, b2.reshape(1, -1), w3, b3.reshape(1, -1))


# ----------------------------------------------------------------------------
# Parameter construction (deterministic, synthetic; BN folded, c1 padded)
# ----------------------------------------------------------------------------
def _init_linear(key, cin, cout):
    k1, k2 = jax.random.split(key)
    bound = 1.0 / jnp.sqrt(jnp.float32(cin))
    w = jax.random.uniform(k1, (cin, cout), jnp.float32, -bound, bound)
    b = jax.random.uniform(k2, (cout,), jnp.float32, -bound, bound)
    return w, b


def _init_bn(key, c):
    k1, k2, k3, k4 = jax.random.split(key, 4)
    gamma = 1.0 + 0.1 * jax.random.normal(k1, (c,), jnp.float32)
    beta = 0.1 * jax.random.normal(k2, (c,), jnp.float32)
    mean = 0.1 * jax.random.normal(k3, (c,), jnp.float32)
    var = 1.0 + 0.1 * jax.random.uniform(k4, (c,), jnp.float32)
    return gamma, beta, mean, var


def _fold_bn(w, b, bn):
    gamma, beta, mean, var = bn
    scale = gamma / jnp.sqrt(var + EPS)
    return w * scale[None, :], (b - mean) * scale + beta


def make_params(key, classes):
    keys = iter(jax.random.split(key, 32))

    def conv_bn(cin, cout, pad_to=None):
        w, b = _init_linear(next(keys), cin, cout)
        w, b = _fold_bn(w, b, _init_bn(next(keys), cout))
        if pad_to is not None and pad_to > cin:
            w = jnp.pad(w, ((0, pad_to - cin), (0, 0)))   # zero rows: exact
        return w, b

    def lin(cin, cout):
        return _init_linear(next(keys), cin, cout)

    tnet3d = dict(
        c1=conv_bn(3, 64, pad_to=PAD_CIN), c2=conv_bn(64, 128),
        c3=conv_bn(128, 1024),
        f1=conv_bn(1024, 512), f2=conv_bn(512, 256), f3=lin(256, 9),
    )
    base = dict(
        c1=conv_bn(3, 64, pad_to=PAD_CIN), c2=conv_bn(64, 128),
        c3=conv_bn(128, 1024),
    )
    head = dict(f1=conv_bn(1024, 512), f2=conv_bn(512, 256),
                f3=lin(256, classes))
    return dict(tnet3d=tnet3d, base=base, head=head)


# ----------------------------------------------------------------------------
# Forward pass (Pallas kernels on the hot path, tiny glue in plain JAX)
# ----------------------------------------------------------------------------
def classifier_forward(params, x):
    """x: (B, 3, N) float32 (same NCL layout as the PyTorch module's input)."""
    B, C, N = x.shape
    xt = jnp.transpose(x, (0, 2, 1))                 # (B, N, 3)

    # --- TNet_3d: fused point MLP + max pool, then fused FC head + eye ---
    p = params["tnet3d"]
    g = point_mlp_maxpool(xt, p)                     # (B, 1024)
    t9 = fused_fc_head(g, p["f1"], p["f2"], p["f3"], add_eye=True)   # (B, 9)
    trans_point = t9.reshape(B, 3, 3)

    # apply input transform: tiny (N,3)@(3,3) batched matmul — JAX glue
    xtr = jnp.einsum("bnc,bcd->bnd", xt, trans_point)                # (B, N, 3)

    # --- Base_Feature: fused point MLP + global max pool ---
    global_feature = point_mlp_maxpool(xtr, params["base"])          # (B, 1024)

    # --- classification head (dropout = identity in eval) + log_softmax ---
    p = params["head"]
    out = fused_fc_head(global_feature, p["f1"], p["f2"], p["f3"],
                        log_softmax_out=True)                        # (B, K)

    trans_feature = None   # feature_trans=False in Classfier's Base_Feature
    return out, trans_point, trans_feature


# ----------------------------------------------------------------------------
# Pure-JAX reference (same folded params) for a correctness check
# ----------------------------------------------------------------------------
def reference_forward(params, x):
    def d(h, wb, relu=True):
        w, b = wb
        y = h @ w + b
        return jnp.maximum(y, 0.0) if relu else y

    B, C, N = x.shape
    xt = jnp.transpose(x, (0, 2, 1))
    flat = xt.reshape(B * N, C)

    def point_stage(flat3, p):
        w1p, b1 = p["c1"]                       # padded (8, 64): use first 3 rows
        h = jnp.maximum(flat3 @ w1p[:3] + b1, 0.0)
        h = d(h, p["c2"])
        h = d(h, p["c3"])
        return jnp.max(h.reshape(B, N, 1024), axis=1)

    p = params["tnet3d"]
    g = point_stage(flat, p)
    t = d(d(g, p["f1"]), p["f2"])
    t = d(t, p["f3"], relu=False)
    trans_point = (t + jnp.eye(3, dtype=jnp.float32).reshape(1, 9)).reshape(B, 3, 3)

    xtr = jnp.einsum("bnc,bcd->bnd", xt, trans_point)
    gf = point_stage(xtr.reshape(B * N, 3), params["base"])

    p = params["head"]
    logits = d(d(d(gf, p["f1"]), p["f2"]), p["f3"], relu=False)
    return jax.nn.log_softmax(logits, axis=1), trans_point, None


# ----------------------------------------------------------------------------
if __name__ == "__main__":
    key = jax.random.PRNGKey(0)
    k_param, k_x = jax.random.split(key)

    B, N, classes = 2, 16, 10
    x = jax.random.normal(k_x, (B, 3, N), dtype=jnp.float32)   # NCL, like PyTorch
    params = make_params(k_param, classes)

    out, trans_point, trans_feature = classifier_forward(params, x)
    out = jax.block_until_ready(out)
    trans_point = jax.block_until_ready(trans_point)

    ref_out, ref_tp, _ = reference_forward(params, x)
    assert out.shape == (B, classes)
    assert trans_point.shape == (B, 3, 3)
    assert trans_feature is None
    assert jnp.allclose(out, ref_out, atol=1e-4, rtol=1e-4)
    assert jnp.allclose(trans_point, ref_tp, atol=1e-4, rtol=1e-4)

    print("KERNEL_OK")
</pallas_src>

<mosaic_0001>
module attributes {stable_mosaic.version = 11 : i64} {
  func.func @_point_mlp_max_kernel(%arg0: i32, %arg1: i32, %arg2: memref<1x16x8xf32, #tpu.memory_space<vmem>>, %arg3: memref<8x64xf32, #tpu.memory_space<vmem>>, %arg4: memref<1x64xf32, #tpu.memory_space<vmem>>, %arg5: memref<64x128xf32, #tpu.memory_space<vmem>>, %arg6: memref<1x128xf32, #tpu.memory_space<vmem>>, %arg7: memref<128x1024xf32, #tpu.memory_space<vmem>>, %arg8: memref<1x1024xf32, #tpu.memory_space<vmem>>, %arg9: memref<1x1x1024xf32, #tpu.memory_space<vmem>>) attributes {dimension_semantics = [#tpu.dimension_semantics<parallel>, #tpu.dimension_semantics<arbitrary>], iteration_bounds = array<i64: 2, 1>, scalar_prefetch = 0 : i64, scratch_operands = 0 : i64, tpu.core_type = #tpu.core_type<tc>, window_params = [{transform_indices = @transform_0, window_bounds = array<i64: 1, 16, 8>}, {pipeline_mode = #tpu.pipeline_mode<synchronous>, transform_indices = @transform_1, window_bounds = array<i64: 8, 64>}, {pipeline_mode = #tpu.pipeline_mode<synchronous>, transform_indices = @transform_2, window_bounds = array<i64: 1, 64>}, {pipeline_mode = #tpu.pipeline_mode<synchronous>, transform_indices = @transform_3, window_bounds = array<i64: 64, 128>}, {pipeline_mode = #tpu.pipeline_mode<synchronous>, transform_indices = @transform_4, window_bounds = array<i64: 1, 128>}, {pipeline_mode = #tpu.pipeline_mode<synchronous>, transform_indices = @transform_5, window_bounds = array<i64: 128, 1024>}, {pipeline_mode = #tpu.pipeline_mode<synchronous>, transform_indices = @transform_6, window_bounds = array<i64: 1, 1024>}, {transform_indices = @transform_7, window_bounds = array<i64: 1, 1, 1024>}]} {
    %c0 = arith.constant 0 : index
    %c0_0 = arith.constant 0 : index
    %c0_1 = arith.constant 0 : index
    %0 = vector.load %arg2[%c0, %c0_0, %c0_1] : memref<1x16x8xf32, #tpu.memory_space<vmem>>, vector<1x16x8xf32>
    %1 = vector.shape_cast %0 : vector<1x16x8xf32> to vector<16x8xf32>
    %c0_2 = arith.constant 0 : index
    %c0_3 = arith.constant 0 : index
    %2 = vector.load %arg3[%c0_2, %c0_3] : memref<8x64xf32, #tpu.memory_space<vmem>>, vector<8x64xf32>
    %cst = arith.constant dense<0.000000e+00> : vector<16x64xf32>
    %3 = tpu.matmul %1, %2, %cst {dimension_numbers = #tpu.dot_dimension_numbers<[1], [0], [0], [1], [0, 0, 1, 1], [], []>} : vector<16x8xf32>, vector<8x64xf32>, vector<16x64xf32> -> vector<16x64xf32>
    %c0_4 = arith.constant 0 : index
    %c0_5 = arith.constant 0 : index
    %4 = vector.load %arg4[%c0_4, %c0_5] : memref<1x64xf32, #tpu.memory_space<vmem>>, vector<1x64xf32>
    %5 = vector.broadcast %4 : vector<1x64xf32> to vector<16x64xf32>
    %6 = arith.addf %3, %5 : vector<16x64xf32>
    %cst_6 = arith.constant 0.000000e+00 : f32
    %7 = vector.broadcast %cst_6 : f32 to vector<16x64xf32>
    %8 = arith.maximumf %6, %7 : vector<16x64xf32>
    %c0_7 = arith.constant 0 : index
    %c0_8 = arith.constant 0 : index
    %9 = vector.load %arg5[%c0_7, %c0_8] : memref<64x128xf32, #tpu.memory_space<vmem>>, vector<64x128xf32>
    %cst_9 = arith.constant dense<0.000000e+00> : vector<16x128xf32>
    %10 = tpu.matmul %8, %9, %cst_9 {dimension_numbers = #tpu.dot_dimension_numbers<[1], [0], [0], [1], [0, 0, 1, 1], [], []>} : vector<16x64xf32>, vector<64x128xf32>, vector<16x128xf32> -> vector<16x128xf32>
    %c0_10 = arith.constant 0 : index
    %c0_11 = arith.constant 0 : index
    %11 = vector.load %arg6[%c0_10, %c0_11] : memref<1x128xf32, #tpu.memory_space<vmem>>, vector<1x128xf32>
    %12 = vector.broadcast %11 : vector<1x128xf32> to vector<16x128xf32>
    %13 = arith.addf %10, %12 : vector<16x128xf32>
    %cst_12 = arith.constant 0.000000e+00 : f32
    %14 = vector.broadcast %cst_12 : f32 to vector<16x128xf32>
    %15 = arith.maximumf %13, %14 : vector<16x128xf32>
    %c0_13 = arith.constant 0 : index
    %c0_14 = arith.constant 0 : index
    %16 = vector.load %arg7[%c0_13, %c0_14] : memref<128x1024xf32, #tpu.memory_space<vmem>>, vector<128x1024xf32>
    %cst_15 = arith.constant dense<0.000000e+00> : vector<16x1024xf32>
    %17 = tpu.matmul %15, %16, %cst_15 {dimension_numbers = #tpu.dot_dimension_numbers<[1], [0], [0], [1], [0, 0, 1, 1], [], []>} : vector<16x128xf32>, vector<128x1024xf32>, vector<16x1024xf32> -> vector<16x1024xf32>
    %c0_16 = arith.constant 0 : index
    %c0_17 = arith.constant 0 : index
    %18 = vector.load %arg8[%c0_16, %c0_17] : memref<1x1024xf32, #tpu.memory_space<vmem>>, vector<1x1024xf32>
    %19 = vector.broadcast %18 : vector<1x1024xf32> to vector<16x1024xf32>
    %20 = arith.addf %17, %19 : vector<16x1024xf32>
    %cst_18 = arith.constant 0.000000e+00 : f32
    %21 = vector.broadcast %cst_18 : f32 to vector<16x1024xf32>
    %22 = arith.maximumf %20, %21 : vector<16x1024xf32>
    %cst_19 = arith.constant dense<0xFF800000> : vector<1024xf32>
    %23 = vector.multi_reduction <maximumf>, %22, %cst_19 [0] : vector<16x1024xf32> to vector<1024xf32>
    %24 = vector.shape_cast %23 : vector<1024xf32> to vector<1x1024xf32>
    %c0_i32 = arith.constant 0 : i32
    %25 = arith.cmpi eq, %arg1, %c0_i32 : i32
    %26 = arith.extui %25 : i1 to i32
    %c0_i32_20 = arith.constant 0 : i32
    %27 = arith.cmpi ne, %26, %c0_i32_20 : i32
    scf.if %27 {
      %cst_27 = arith.constant 0xFF800000 : f32
      %32 = vector.broadcast %cst_27 : f32 to vector<1x1x1024xf32>
      %c0_28 = arith.constant 0 : index
      %c0_29 = arith.constant 0 : index
      %c0_30 = arith.constant 0 : index
      %33 = vector.load %arg9[%c0_28, %c0_29, %c0_30] : memref<1x1x1024xf32, #tpu.memory_space<vmem>>, vector<1x1x1024xf32>
      tpu.vector_store %arg9[%c0_28, %c0_29, %c0_30], %32 {strides = array<i32>} : memref<1x1x1024xf32, #tpu.memory_space<vmem>>, vector<1x1x1024xf32>,
    } else {
    }
    %c0_21 = arith.constant 0 : index
    %c0_22 = arith.constant 0 : index
    %c0_23 = arith.constant 0 : index
    %28 = vector.load %arg9[%c0_21, %c0_22, %c0_23] : memref<1x1x1024xf32, #tpu.memory_space<vmem>>, vector<1x1x1024xf32>
    %29 = vector.shape_cast %24 : vector<1x1024xf32> to vector<1x1x1024xf32>
    %30 = arith.maximumf %28, %29 : vector<1x1x1024xf32>
    %c0_24 = arith.constant 0 : index
    %c0_25 = arith.constant 0 : index
    %c0_26 = arith.constant 0 : index
    %31 = vector.load %arg9[%c0_24, %c0_25, %c0_26] : memref<1x1x1024xf32, #tpu.memory_space<vmem>>, vector<1x1x1024xf32>
    tpu.vector_store %arg9[%c0_24, %c0_25, %c0_26], %30 {strides = array<i32>} : memref<1x1x1024xf32, #tpu.memory_space<vmem>>, vector<1x1x1024xf32>,
    return
  }
  func.func @transform_0(%arg0: i32, %arg1: i32) -> (i32, i32, i32) {
    %c0_i32 = arith.constant 0 : i32
    %c0_i32_0 = arith.constant 0 : i32
    return %arg0, %arg1, %c0_i32 : i32, i32, i32
  }
  func.func @transform_1(%arg0: i32, %arg1: i32) -> (i32, i32) {
    %c0_i32 = arith.constant 0 : i32
    %c0_i32_0 = arith.constant 0 : i32
    %c0_i32_1 = arith.constant 0 : i32
    return %c0_i32, %c0_i32_0 : i32, i32
  }
  func.func @transform_2(%arg0: i32, %arg1: i32) -> (i32, i32) {
    %c0_i32 = arith.constant 0 : i32
    %c0_i32_0 = arith.constant 0 : i32
    %c0_i32_1 = arith.constant 0 : i32
    return %c0_i32, %c0_i32_0 : i32, i32
  }
  func.func @transform_3(%arg0: i32, %arg1: i32) -> (i32, i32) {
    %c0_i32 = arith.constant 0 : i32
    %c0_i32_0 = arith.constant 0 : i32
    %c0_i32_1 = arith.constant 0 : i32
    return %c0_i32, %c0_i32_0 : i32, i32
  }
  func.func @transform_4(%arg0: i32, %arg1: i32) -> (i32, i32) {
    %c0_i32 = arith.constant 0 : i32
    %c0_i32_0 = arith.constant 0 : i32
    %c0_i32_1 = arith.constant 0 : i32
    return %c0_i32, %c0_i32_0 : i32, i32
  }
  func.func @transform_5(%arg0: i32, %arg1: i32) -> (i32, i32) {
    %c0_i32 = arith.constant 0 : i32
    %c0_i32_0 = arith.constant 0 : i32
    %c0_i32_1 = arith.constant 0 : i32
    return %c0_i32, %c0_i32_0 : i32, i32
  }
  func.func @transform_6(%arg0: i32, %arg1: i32) -> (i32, i32) {
    %c0_i32 = arith.constant 0 : i32
    %c0_i32_0 = arith.constant 0 : i32
    %c0_i32_1 = arith.constant 0 : i32
    return %c0_i32, %c0_i32_0 : i32, i32
  }
  func.func @transform_7(%arg0: i32, %arg1: i32) -> (i32, i32, i32) {
    %c0_i32 = arith.constant 0 : i32
    %c0_i32_0 = arith.constant 0 : i32
    %c0_i32_1 = arith.constant 0 : i32
    return %arg0, %c0_i32, %c0_i32_0 : i32, i32, i32
  }
}

</mosaic_0001>

<llo_original>
// kernel: tpu_custom_call.1
$region0: #{tpu_custom_call.1}
  #allocation0 [shape = 'u32[]', space=smem, size = 0x4, offset = 0x4, fixed_abs, tag = 'smem constant byte address 0x4 - core index']
  #allocation1 [shape = 'u32[72,128]{1,0:T(1,128)}', space=vmem, size = 0x9000, scoped, tag = 'internal scratch']
  %s0 = inlined_call_operand.vmem [shape: f32[2,16,8], index: 0, kind: input, shape index: {}]
  %s1 = inlined_call_operand.vmem [shape: f32[8,64], index: 1, kind: input, shape index: {}]
  %s2 = inlined_call_operand.vmem [shape: f32[1,64], index: 2, kind: input, shape index: {}]
  %s3 = inlined_call_operand.hbm [shape: f32[64,128], index: 3, kind: input, shape index: {}]
  %s4 = inlined_call_operand.vmem [shape: f32[1,128], index: 4, kind: input, shape index: {}]
  %s5 = inlined_call_operand.hbm [shape: f32[128,1024], index: 5, kind: input, shape index: {}]
  %s6 = inlined_call_operand.vmem [shape: f32[1,1024], index: 6, kind: input, shape index: {}]
  %s7 = inlined_call_operand.hbm [shape: f32[2,1,1024], index: 7, kind: output, shape index: {}]
  %s8 = sld [smem:[#allocation0]]
  $region73: #{tpu_custom_call.1} parent=0
    _
  %s10 = ssub.s32 1, %s8
  %s11 = scalar_select 0, %s10, %s8
  $region1: #{tpu_custom_call.1} parent=0
    #allocation2 [shape = 'u8[32768]{0}', space=vmem, size = 0x8000, scoped, tag = 'input window, operand 3, single buffered']
    #allocation3 [shape = 's32[2]{0}', space=sflag, size = 0x8, scoped, tag = 'scoped memory for tpu_custom_call.1']
    #allocation4 [shape = 's32[2]{0}', space=sflag, size = 0x8, scoped, tag = 'scoped memory for tpu_custom_call.1']
    #allocation5 [shape = 'u8[524288]{0}', space=vmem, size = 0x80000, scoped, tag = 'input window, operand 5, single buffered']
    #allocation6 [shape = 's32[1]{0}', space=sflag, size = 0x4, scoped, tag = 'scoped memory for tpu_custom_call.1']
    #allocation7 [shape = 'u8[8192]{0}', space=vmem, size = 0x2000, scoped, tag = 'output window, operand 0']
    %12 = vsyncpa [#allocation3], 0
    %13 = vsyncpa [#allocation6], 0
    %14 = vsyncpa [#allocation4], 0
    %s15 = scalar_lea.sflag [#allocation4], 1
    %16 = vsyncpa %s15, 0
    loop: start=0, step=1, limit=4
    $region2: #{tpu_custom_call.1} parent=1 // loop_pre_header
      _
    $region3: #{tpu_custom_call.1} parent=1 // loop_header
      %s18 = sphi 0, %s22
      %p19 = scmp.ge.s32.totalorder %s18, 4
      %s25 = sphi 0, %s37
      %s26 = sphi 0, %s33
      %s27 = sphi 0, %s25
      %s28 = sphi 0, %s26
      %s29 = sphi 0, %s27
      %s30 = sphi 0, %s28
      %s42 = sphi 0, %s44
      %s45 = sphi 0, %s42
      %s46 = sphi 0, %s45
      %s62 = sphi 0, %s46
      %s66 = sphi 0, %s66
      %s68 = sphi 0, %s66
      %s69 = sphi 0, %s68
      %s83 = sphi 0, %s69
      %s87 = sphi 0, %s87
      %s89 = sphi 0, %s87
      %s90 = sphi 0, %s89
      %s104 = sphi 0, %s90
      %s108 = sphi 0, %s108
      %s110 = sphi 0, %s108
      %s111 = sphi 0, %s110
      %s125 = sphi 0, %s111
      %s129 = sphi 0, %s129
      %s131 = sphi 0, %s129
      %s132 = sphi 0, %s131
      %s146 = sphi 0, %s132
      %s150 = sphi 0, %s150
      %s152 = sphi 0, %s150
      %s153 = sphi 0, %s152
      %s167 = sphi 0, %s153
      %s171 = sphi 0, %s171
      %s173 = sphi 0, %s171
      %s174 = sphi 0, %s173
      %s188 = sphi 0, %s174
      %s194 = sphi 0, %s196
      %s197 = sphi 0, %s194
      %s198 = sphi 0, %s197
      %s214 = sphi 0, %s198
    $region4: #{tpu_custom_call.1} parent=1 // loop_header_branch
      %21 = sbr.rel (%p19) target = $region8
    $region5: #{tpu_custom_call.1} parent=1 // loop_body
      %s23 = ssub.s32 %s18, 1
      %s24 = ssub.s32 %s18, 2
      %s31 = sadd.s32 1, %s26
      %p32 = scmp.ge.s32.totalorder %s31, 1
      %s33 = scalar_select %p32, 0, %s31
      %s34 = sadd.s32 1, %s25
      %s35 = scalar_select %p32, %s34, %s25
      %p36 = scmp.ge.s32.totalorder %s35, 2
      %s37 = scalar_select %p36, 0, %s35
      %s38 = ssub.s32 %s25, %s37
      %s39 = ssub.s32 %s26, %s33
      %s40 = sor.u32 %s38, %s39
      %p41 = scmp.eq.s32.totalorder %s40, 0
      %s43 = sadd.s32 %s42, 1
      %s44 = scalar_select %p41, %s42, %s43
      %p47 = pneg %p41
      %p48 = scmp.eq.s32.totalorder %s18, 1
      %p49 = por %p47, %p48
      %p50 = scmp.ne.s32.totalorder %s42, %s45
      %p51 = scmp.eq.s32.totalorder %s18, 0
      %p52 = por %p50, %p51
      %p53 = scmp.ne.s32.totalorder %s42, %s45
      %p54 = scmp.eq.s32.totalorder %s23, 1
      %p55 = por %p53, %p54
      %p56 = scmp.ne.s32.totalorder %s45, %s46
      %p57 = scmp.eq.s32.totalorder %s23, 0
      %p58 = por %p56, %p57
      %p59 = scmp.ne.s32.totalorder %s45, %s46
      %p60 = scmp.eq.s32.totalorder %s24, 1
      %p61 = por %p59, %p60
      %p63 = scmp.ne.s32.totalorder %s46, %s62
      %p64 = scmp.eq.s32.totalorder %s24, 0
      %p65 = por %p63, %p64
      %s67 = sadd.s32 %s66, 1
      %p70 = scmp.eq.s32.totalorder %s18, 1
      %p71 = scmp.ne.s32.totalorder %s66, %s68
      %p72 = scmp.eq.s32.totalorder %s18, 0
      %p73 = por %p71, %p72
      %p74 = scmp.ne.s32.totalorder %s66, %s68
      %p75 = scmp.eq.s32.totalorder %s23, 1
      %p76 = por %p74, %p75
      %p77 = scmp.ne.s32.totalorder %s68, %s69
      %p78 = scmp.eq.s32.totalorder %s23, 0
      %p79 = por %p77, %p78
      %p80 = scmp.ne.s32.totalorder %s68, %s69
      %p81 = scmp.eq.s32.totalorder %s24, 1
      %p82 = por %p80, %p81
      %p84 = scmp.ne.s32.totalorder %s69, %s83
      %p85 = scmp.eq.s32.totalorder %s24, 0
      %p86 = por %p84, %p85
      %s88 = sadd.s32 %s87, 1
      %p91 = scmp.eq.s32.totalorder %s18, 1
      %p92 = scmp.ne.s32.totalorder %s87, %s89
      %p93 = scmp.eq.s32.totalorder %s18, 0
      %p94 = por %p92, %p93
      %p95 = scmp.ne.s32.totalorder %s87, %s89
      %p96 = scmp.eq.s32.totalorder %s23, 1
      %p97 = por %p95, %p96
      %p98 = scmp.ne.s32.totalorder %s89, %s90
      %p99 = scmp.eq.s32.totalorder %s23, 0
      %p100 = por %p98, %p99
      %p101 = scmp.ne.s32.totalorder %s89, %s90
      %p102 = scmp.eq.s32.totalorder %s24, 1
      %p103 = por %p101, %p102
      %p105 = scmp.ne.s32.totalorder %s90, %s104
      %p106 = scmp.eq.s32.totalorder %s24, 0
      %p107 = por %p105, %p106
      %s109 = sadd.s32 %s108, 1
      %p112 = scmp.eq.s32.totalorder %s18, 1
      %p113 = scmp.ne.s32.totalorder %s108, %s110
      %p114 = scmp.eq.s32.totalorder %s18, 0
      %p115 = por %p113, %p114
      %p116 = scmp.ne.s32.totalorder %s108, %s110
      %p117 = scmp.eq.s32.totalorder %s23, 1
      %p118 = por %p116, %p117
      %p119 = scmp.ne.s32.totalorder %s110, %s111
      %p120 = scmp.eq.s32.totalorder %s23, 0
      %p121 = por %p119, %p120
      %p122 = scmp.ne.s32.totalorder %s110, %s111
      %p123 = scmp.eq.s32.totalorder %s24, 1
      %p124 = por %p122, %p123
      %p126 = scmp.ne.s32.totalorder %s111, %s125
      %p127 = scmp.eq.s32.totalorder %s24, 0
      %p128 = por %p126, %p127
      %s130 = sadd.s32 %s129, 1
      %p133 = scmp.eq.s32.totalorder %s18, 1
      %p134 = scmp.ne.s32.totalorder %s129, %s131
      %p135 = scmp.eq.s32.totalorder %s18, 0
      %p136 = por %p134, %p135
      %p137 = scmp.ne.s32.totalorder %s129, %s131
      %p138 = scmp.eq.s32.totalorder %s23, 1
      %p139 = por %p137, %p138
      %p140 = scmp.ne.s32.totalorder %s131, %s132
      %p141 = scmp.eq.s32.totalorder %s23, 0
      %p142 = por %p140, %p141
      %p143 = scmp.ne.s32.totalorder %s131, %s132
      %p144 = scmp.eq.s32.totalorder %s24, 1
      %p145 = por %p143, %p144
      %p147 = scmp.ne.s32.totalorder %s132, %s146
      %p148 = scmp.eq.s32.totalorder %s24, 0
      %p149 = por %p147, %p148
      %s151 = sadd.s32 %s150, 1
      %p154 = scmp.eq.s32.totalorder %s18, 1
      %p155 = scmp.ne.s32.totalorder %s150, %s152
      %p156 = scmp.eq.s32.totalorder %s18, 0
      %p157 = por %p155, %p156
      %p158 = scmp.ne.s32.totalorder %s150, %s152
      %p159 = scmp.eq.s32.totalorder %s23, 1
      %p160 = por %p158, %p159
      %p161 = scmp.ne.s32.totalorder %s152, %s153
      %p162 = scmp.eq.s32.totalorder %s23, 0
      %p163 = por %p161, %p162
      %p164 = scmp.ne.s32.totalorder %s152, %s153
      %p165 = scmp.eq.s32.totalorder %s24, 1
      %p166 = por %p164, %p165
      %p168 = scmp.ne.s32.totalorder %s153, %s167
      %p169 = scmp.eq.s32.totalorder %s24, 0
      %p170 = por %p168, %p169
      %s172 = sadd.s32 %s171, 1
      %p175 = scmp.eq.s32.totalorder %s18, 1
      %p176 = scmp.ne.s32.totalorder %s171, %s173
      %p177 = scmp.eq.s32.totalorder %s18, 0
      %p178 = por %p176, %p177
      %p179 = scmp.ne.s32.totalorder %s171, %s173
      %p180 = scmp.eq.s32.totalorder %s23, 1
      %p181 = por %p179, %p180
      %p182 = scmp.ne.s32.totalorder %s173, %s174
      %p183 = scmp.eq.s32.totalorder %s23, 0
      %p184 = por %p182, %p183
      %p185 = scmp.ne.s32.totalorder %s173, %s174
      %p186 = scmp.eq.s32.totalorder %s24, 1
      %p187 = por %p185, %p186
      %p189 = scmp.ne.s32.totalorder %s174, %s188
      %p190 = scmp.eq.s32.totalorder %s24, 0
      %p191 = por %p189, %p190
      %s192 = ssub.s32 %s25, %s37
      %p193 = scmp.eq.s32.totalorder %s192, 0
      %s195 = sadd.s32 %s194, 1
      %s196 = scalar_select %p193, %s194, %s195
      %p199 = pneg %p193
      %p200 = scmp.eq.s32.totalorder %s18, 1
      %p201 = por %p199, %p200
      %p202 = scmp.ne.s32.totalorder %s194, %s197
      %p203 = scmp.eq.s32.totalorder %s18, 0
      %p204 = por %p202, %p203
      %p205 = scmp.ne.s32.totalorder %s194, %s197
      %p206 = scmp.eq.s32.totalorder %s23, 1
      %p207 = por %p205, %p206
      %p208 = scmp.ne.s32.totalorder %s197, %s198
      %p209 = scmp.eq.s32.totalorder %s23, 0
      %p210 = por %p208, %p209
      %p211 = scmp.ne.s32.totalorder %s197, %s198
      %p212 = scmp.eq.s32.totalorder %s24, 1
      %p213 = por %p211, %p212
      %p215 = scmp.ne.s32.totalorder %s198, %s214
      %p216 = scmp.eq.s32.totalorder %s24, 0
      %p217 = por %p215, %p216
      %p218 = scmp.le.s32.totalorder 1, %s18
      %p219 = scmp.lt.s32.totalorder %s18, 3
      %p220 = pnand %p218, %p219
      %p221 = pneg %p220
      // Predicated region
      $region9: #{tpu_custom_call.1} parent=5 // pred_check
        _
      $region10: #{tpu_custom_call.1} parent=5 // pred_check_branch
        %223 = sbr.rel (%p220) target = $region12
      $region11: #{tpu_custom_call.1} parent=5 // pred_region
        %s224 = ssub.s32 %s18, 1
        // Predicated region
        $region13: #{tpu_custom_call.1} parent=11 // pred_check
          %p225 = pneg %p79
        $region14: #{tpu_custom_call.1} parent=11 // pred_check_branch
          %227 = sbr.rel (%p225) target = $region16
        $region15: #{tpu_custom_call.1} parent=11 // pred_region
          _
        $region16: #{tpu_custom_call.1} parent=11 // pred_fallthru
          _
        // Predicated region
        $region17: #{tpu_custom_call.1} parent=11 // pred_check
          %p228 = pneg %p100
        $region18: #{tpu_custom_call.1} parent=11 // pred_check_branch
          %230 = sbr.rel (%p228) target = $region20
        $region19: #{tpu_custom_call.1} parent=11 // pred_region
          _
        $region20: #{tpu_custom_call.1} parent=11 // pred_fallthru
          _
        // Predicated region
        $region21: #{tpu_custom_call.1} parent=11 // pred_check
          %p231 = pneg %p121
        $region22: #{tpu_custom_call.1} parent=11 // pred_check_branch
          %233 = sbr.rel (%p231) target = $region24
        $region23: #{tpu_custom_call.1} parent=11 // pred_region
          %235 = vsyncadd [#allocation3], 0
          %s236 = sshll.u32 %s3, 4
          %s237 = int_to_ptr.hbm [resolvable:$true] %s236
          %s238 = sshll.u32 [#allocation2], 4
          %s239 = int_to_ptr.vmem [resolvable:$true] %s238
          %244 = dma.hbm_to_vmem [thread:$0]  %s237, 1024, %s239, [#allocation3], 128, 128, 8
        $region24: #{tpu_custom_call.1} parent=11 // pred_fallthru
          _
        // Predicated region
        $region25: #{tpu_custom_call.1} parent=11 // pred_check
          %p245 = pneg %p142
        $region26: #{tpu_custom_call.1} parent=11 // pred_check_branch
          %247 = sbr.rel (%p245) target = $region28
        $region27: #{tpu_custom_call.1} parent=11 // pred_region
          _
        $region28: #{tpu_custom_call.1} parent=11 // pred_fallthru
          _
        // Predicated region
        $region29: #{tpu_custom_call.1} parent=11 // pred_check
          %p248 = pneg %p163
        $region30: #{tpu_custom_call.1} parent=11 // pred_check_branch
          %250 = sbr.rel (%p248) target = $region32
        $region31: #{tpu_custom_call.1} parent=11 // pred_region
          %252 = vsyncadd [#allocation6], 0
          %s253 = sshll.u32 %s5, 4
          %s254 = int_to_ptr.hbm [resolvable:$true] %s253
          %s255 = sshll.u32 [#allocation5], 4
          %s256 = int_to_ptr.vmem [resolvable:$true] %s255
          %261 = dma.hbm_to_vmem [thread:$0]  %s254, 16384, %s256, [#allocation6], 1024, 1024, 64
        $region32: #{tpu_custom_call.1} parent=11 // pred_fallthru
          _
        // Predicated region
        $region33: #{tpu_custom_call.1} parent=11 // pred_check
          %p262 = pneg %p184
        $region34: #{tpu_custom_call.1} parent=11 // pred_check_branch
          %264 = sbr.rel (%p262) target = $region36
        $region35: #{tpu_custom_call.1} parent=11 // pred_region
          _
        $region36: #{tpu_custom_call.1} parent=11 // pred_fallthru
          _
      $region12: #{tpu_custom_call.1} parent=5 // pred_fallthru
        _
      %p265 = scmp.lt.s32.totalorder %s18, 2
      // Predicated region
      $region37: #{tpu_custom_call.1} parent=5 // pred_check
        %p266 = pneg %p265
      $region38: #{tpu_custom_call.1} parent=5 // pred_check_branch
        %268 = sbr.rel (%p266) target = $region40
      $region39: #{tpu_custom_call.1} parent=5 // pred_region
        // Predicated region
        $region41: #{tpu_custom_call.1} parent=39 // pred_check
          %p269 = pneg %p52
        $region42: #{tpu_custom_call.1} parent=39 // pred_check_branch
          %271 = sbr.rel (%p269) target = $region44
        $region43: #{tpu_custom_call.1} parent=39 // pred_region
          %s272 = smul.u32 2, %s26
          %p273 = scmp.lt.s32.totalorder %s25, 1
          %s274 = scalar_select %p273, %s25, 1
          %p275 = scmp.lt.s32.totalorder %s272, 1
          %s276 = scalar_select %p275, %s272, 1
          %s277 = smul.addr %s274, 2
          %s278 = sadd.s32 %s276, %s277
          %s279 = smul.addr %s278, 8
          %s280 = scalar_lea.vmem %s0, %s279
          %s281 = smul.u32 2, %s26
        $region44: #{tpu_custom_call.1} parent=39 // pred_fallthru
          _
      $region40: #{tpu_custom_call.1} parent=5 // pred_fallthru
        _
      %p282 = scmp.le.s32.totalorder 1, %s18
      %p283 = scmp.lt.s32.totalorder %s18, 3
      %p284 = pnand %p282, %p283
      %p285 = pneg %p284
      // Predicated region
      $region45: #{tpu_custom_call.1} parent=5 // pred_check
        _
      $region46: #{tpu_custom_call.1} parent=5 // pred_check_branch
        %287 = sbr.rel (%p284) target = $region48
      $region47: #{tpu_custom_call.1} parent=5 // pred_region
        %s288 = ssub.s32 %s18, 1
        // Predicated region
        $region49: #{tpu_custom_call.1} parent=47 // pred_check
          %p289 = pneg %p121
        $region50: #{tpu_custom_call.1} parent=47 // pred_check_branch
          %291 = sbr.rel (%p289) target = $region52
        $region51: #{tpu_custom_call.1} parent=47 // pred_region
          %293 = dma.done [#allocation3], 1024
        $region52: #{tpu_custom_call.1} parent=47 // pred_fallthru
          _
        // Predicated region
        $region53: #{tpu_custom_call.1} parent=47 // pred_check
          %p294 = pneg %p163
        $region54: #{tpu_custom_call.1} parent=47 // pred_check_branch
          %296 = sbr.rel (%p294) target = $region56
        $region55: #{tpu_custom_call.1} parent=47 // pred_region
          %298 = dma.done [#allocation6], 16384
        $region56: #{tpu_custom_call.1} parent=47 // pred_fallthru
          _
        %s299 = smul.u32 2, %s28
        %p300 = scmp.lt.s32.totalorder %s27, 1
        %s301 = scalar_select %p300, %s27, 1
        %p302 = scmp.lt.s32.totalorder %s299, 1
        %s303 = scalar_select %p302, %s299, 1
        %s304 = smul.addr %s301, 2
        %s305 = sadd.s32 %s303, %s304
        %s306 = smul.addr %s305, 8
        %s307 = scalar_lea.vmem %s0, %s306
        %p308 = pneg %p58
        %p309 = pneg %p55
        %p310 = pneg %p79
        %p311 = pneg %p76
        %p312 = pneg %p100
        %p313 = pneg %p97
        %p314 = pneg %p121
        %p315 = pneg %p118
        %p316 = pneg %p142
        %p317 = pneg %p139
        %p318 = pneg %p163
        %p319 = pneg %p160
        %p320 = pneg %p184
        %p321 = pneg %p181
        %p322 = pneg %p210
        %p323 = pneg %p207
        %s324 = sand.u32 %s197, 1
        %s325 = scalar_lea.sflag [#allocation4], %s324
        %s326 = sand.u32 %s197, 1
        %s327 = smul.addr %s326, 8
        %s328 = scalar_lea.vmem [#allocation7], %s327
        %s329 = smul.u32 2, %s28
        %p330 = scmp.lt.s32.totalorder %s27, 1
        %s331 = scalar_select %p330, %s27, 1
        %p332 = scmp.lt.s32.totalorder %s329, 1
        %s333 = scalar_select %p332, %s329, 1
        %s334 = smul.addr %s331, 2
        %s335 = sadd.s32 %s333, %s334
        %s336 = smul.addr %s335, 8
        %s337 = scalar_lea.vmem %s0, %s336
        %s338 = smul.u32 2, %s28
        %v339 = vld [vmem:[%s337] sm:$0xff]
        %v340 = vld [vmem:[%s337 + $0x8] sm:$0xff]
        %v341 = vld [vmem:[%s1] sm:$0xff]
        %v342 = vld [vmem:[%s2] sm:$0x1]
        %v344 = vperm.slane %v342, 0
        %vm346 = vcmask 64512
        %v348 = vsel %vm346, %v339, 0
        %v351 = vsel %vm346, %v340, 0
        %353 = vmatpush.msra.mxu0 0.0
        %354 = vmatpush.msra.mxu0 0.0
        %355 = vmatpush.msra.mxu0 0.0
        %356 = vmatpush.msra.mxu0 0.0
        %357 = vmatpush.msra.mxu0 0.0
        %358 = vmatpush.msra.mxu0 0.0
        %359 = vmatpush.msra.mxu0 0.0
        %360 = vmatpush.msra.mxu0 0.0
        %361 = vmatpush.msra.mxu0 0.0
        %362 = vmatpush.msra.mxu0 0.0
        %363 = vmatpush.msra.mxu0 0.0
        %364 = vmatpush.msra.mxu0 0.0
        %365 = vmatpush.msra.mxu0 0.0
        %366 = vmatpush.msra.mxu0 0.0
        %367 = vmatpush.msra.mxu0 0.0
        %368 = vmatpush.msra.mxu0 %v341
        %369 = vmatmul.f32.gmra.mxu0 %v348
        %v370 = vpop.f32.mrf.mxu0
        %v371 = vadd.f32 %v344, %v370
        %372 = vmatmul.f32.gmra.mxu0 %v351
        %v373 = vpop.f32.mrf.mxu0
        %v374 = vadd.f32 %v344, %v373
        %375 = vdwg.mxu0
        %v376 = vmax.f32 %v371, 0.0
        %v377 = vmax.f32 %v374, 0.0
        %v378 = vld [vmem:[#allocation2] sm:$0xff]
        %v379 = vld [vmem:[#allocation2 + $0x8] sm:$0xff]
        %v380 = vld [vmem:[#allocation2 + $0x10] sm:$0xff]
        %v381 = vld [vmem:[#allocation2 + $0x18] sm:$0xff]
        %v382 = vld [vmem:[#allocation2 + $0x20] sm:$0xff]
        %v383 = vld [vmem:[#allocation2 + $0x28] sm:$0xff]
        %v384 = vld [vmem:[#allocation2 + $0x30] sm:$0xff]
        %v385 = vld [vmem:[#allocation2 + $0x38] sm:$0xff]
        %v386 = vld [vmem:[%s4] sm:$0x1]
        %v388 = vperm.slane %v386, 0
        %vm390 = vcmask 523264
        %v392 = vsel %vm390, %v376, 0
        %v395 = vsel %vm390, %v377, 0
        %397 = vmatpush.msra.mxu0 0.0
        %398 = vmatpush.msra.mxu0 0.0
        %399 = vmatpush.msra.mxu0 0.0
        %400 = vmatpush.msra.mxu0 0.0
        %401 = vmatpush.msra.mxu0 0.0
        %402 = vmatpush.msra.mxu0 0.0
        %403 = vmatpush.msra.mxu0 0.0
        %404 = vmatpush.msra.mxu0 0.0
        %405 = vmatpush.msra.mxu0 %v385
        %406 = vmatpush.msra.mxu0 %v384
        %407 = vmatpush.msra.mxu0 %v383
        %408 = vmatpush.msra.mxu0 %v382
        %409 = vmatpush.msra.mxu0 %v381
        %410 = vmatpush.msra.mxu0 %v380
        %411 = vmatpush.msra.mxu0 %v379
        %412 = vmatpush.msra.mxu0 %v378
        %413 = vmatmul.f32.gmra.mxu0 %v392
        %v414 = vpop.f32.mrf.mxu0
        %v415 = vadd.f32 %v388, %v414
        %416 = vmatmul.f32.gmra.mxu0 %v395
        %v417 = vpop.f32.mrf.mxu0
        %v418 = vadd.f32 %v388, %v417
        %419 = vdwg.mxu0
        %v420 = vmax.f32 %v415, 0.0
        %v421 = vmax.f32 %v418, 0.0
        %v422 = vld [vmem:[#allocation5] sm:$0xff]
        %v423 = vld [vmem:[#allocation5 + $0x8] sm:$0xff]
        %v424 = vld [vmem:[#allocation5 + $0x10] sm:$0xff]
        %v425 = vld [vmem:[#allocation5 + $0x18] sm:$0xff]
        %v426 = vld [vmem:[#allocation5 + $0x20] sm:$0xff]
        %v427 = vld [vmem:[#allocation5 + $0x28] sm:$0xff]
        %v428 = vld [vmem:[#allocation5 + $0x30] sm:$0xff]
        %v429 = vld [vmem:[#allocation5 + $0x38] sm:$0xff]
        %v430 = vld [vmem:[#allocation5 + $0x40] sm:$0xff]
        %v431 = vld [vmem:[#allocation5 + $0x48] sm:$0xff]
        %v432 = vld [vmem:[#allocation5 + $0x50] sm:$0xff]
        %v433 = vld [vmem:[#allocation5 + $0x58] sm:$0xff]
        %v434 = vld [vmem:[#allocation5 + $0x60] sm:$0xff]
        %v435 = vld [vmem:[#allocation5 + $0x68] sm:$0xff]
        %v436 = vld [vmem:[#allocation5 + $0x70] sm:$0xff]
        %v437 = vld [vmem:[#allocation5 + $0x78] sm:$0xff]
        %v438 = vld [vmem:[#allocation5 + $0x80] sm:$0xff]
        %v439 = vld [vmem:[#allocation5 + $0x88] sm:$0xff]
        %v440 = vld [vmem:[#allocation5 + $0x90] sm:$0xff]
        %v441 = vld [vmem:[#allocation5 + $0x98] sm:$0xff]
        %v442 = vld [vmem:[#allocation5 + $0xa0] sm:$0xff]
        %v443 = vld [vmem:[#allocation5 + $0xa8] sm:$0xff]
        %v444 = vld [vmem:[#allocation5 + $0xb0] sm:$0xff]
        %v445 = vld [vmem:[#allocation5 + $0xb8] sm:$0xff]
        %v446 = vld [vmem:[#allocation5 + $0xc0] sm:$0xff]
        %v447 = vld [vmem:[#allocation5 + $0xc8] sm:$0xff]
        %v448 = vld [vmem:[#allocation5 + $0xd0] sm:$0xff]
        %v449 = vld [vmem:[#allocation5 + $0xd8] sm:$0xff]
        %v450 = vld [vmem:[#allocation5 + $0xe0] sm:$0xff]
        %v451 = vld [vmem:[#allocation5 + $0xe8] sm:$0xff]
        %v452 = vld [vmem:[#allocation5 + $0xf0] sm:$0xff]
        %v453 = vld [vmem:[#allocation5 + $0xf8] sm:$0xff]
        %v454 = vld [vmem:[#allocation5 + $0x100] sm:$0xff]
        %v455 = vld [vmem:[#allocation5 + $0x108] sm:$0xff]
        %v456 = vld [vmem:[#allocation5 + $0x110] sm:$0xff]
        %v457 = vld [vmem:[#allocation5 + $0x118] sm:$0xff]
        %v458 = vld [vmem:[#allocation5 + $0x120] sm:$0xff]
        %v459 = vld [vmem:[#allocation5 + $0x128] sm:$0xff]
        %v460 = vld [vmem:[#allocation5 + $0x130] sm:$0xff]
        %v461 = vld [vmem:[#allocation5 + $0x138] sm:$0xff]
        %v462 = vld [vmem:[#allocation5 + $0x140] sm:$0xff]
        %v463 = vld [vmem:[#allocation5 + $0x148] sm:$0xff]
        %v464 = vld [vmem:[#allocation5 + $0x150] sm:$0xff]
        %v465 = vld [vmem:[#allocation5 + $0x158] sm:$0xff]
        %v466 = vld [vmem:[#allocation5 + $0x160] sm:$0xff]
        %v467 = vld [vmem:[#allocation5 + $0x168] sm:$0xff]
        %v468 = vld [vmem:[#allocation5 + $0x170] sm:$0xff]
        %v469 = vld [vmem:[#allocation5 + $0x178] sm:$0xff]
        %v470 = vld [vmem:[#allocation5 + $0x180] sm:$0xff]
        %v471 = vld [vmem:[#allocation5 + $0x188] sm:$0xff]
        %v472 = vld [vmem:[#allocation5 + $0x190] sm:$0xff]
        %v473 = vld [vmem:[#allocation5 + $0x198] sm:$0xff]
        %v474 = vld [vmem:[#allocation5 + $0x1a0] sm:$0xff]
        %v475 = vld [vmem:[#allocation5 + $0x1a8] sm:$0xff]
        %v476 = vld [vmem:[#allocation5 + $0x1b0] sm:$0xff]
        %v477 = vld [vmem:[#allocation5 + $0x1b8] sm:$0xff]
        %v478 = vld [vmem:[#allocation5 + $0x1c0] sm:$0xff]
        %v479 = vld [vmem:[#allocation5 + $0x1c8] sm:$0xff]
        %v480 = vld [vmem:[#allocation5 + $0x1d0] sm:$0xff]
        %v481 = vld [vmem:[#allocation5 + $0x1d8] sm:$0xff]
        %v482 = vld [vmem:[#allocation5 + $0x1e0] sm:$0xff]
        %v483 = vld [vmem:[#allocation5 + $0x1e8] sm:$0xff]
        %v484 = vld [vmem:[#allocation5 + $0x1f0] sm:$0xff]
        %v485 = vld [vmem:[#allocation5 + $0x1f8] sm:$0xff]
        %v486 = vld [vmem:[#allocation5 + $0x200] sm:$0xff]
        %v487 = vld [vmem:[#allocation5 + $0x208] sm:$0xff]
        %v488 = vld [vmem:[#allocation5 + $0x210] sm:$0xff]
        %v489 = vld [vmem:[#allocation5 + $0x218] sm:$0xff]
        %v490 = vld [vmem:[#allocation5 + $0x220] sm:$0xff]
        %v491 = vld [vmem:[#allocation5 + $0x228] sm:$0xff]
        %v492 = vld [vmem:[#allocation5 + $0x230] sm:$0xff]
        %v493 = vld [vmem:[#allocation5 + $0x238] sm:$0xff]
        %v494 = vld [vmem:[#allocation5 + $0x240] sm:$0xff]
        %v495 = vld [vmem:[#allocation5 + $0x248] sm:$0xff]
        %v496 = vld [vmem:[#allocation5 + $0x250] sm:$0xff]
        %v497 = vld [vmem:[#allocation5 + $0x258] sm:$0xff]
        %v498 = vld [vmem:[#allocation5 + $0x260] sm:$0xff]
        %v499 = vld [vmem:[#allocation5 + $0x268] sm:$0xff]
        %v500 = vld [vmem:[#allocation5 + $0x270] sm:$0xff]
        %v501 = vld [vmem:[#allocation5 + $0x278] sm:$0xff]
        %v502 = vld [vmem:[#allocation5 + $0x280] sm:$0xff]
        %v503 = vld [vmem:[#allocation5 + $0x288] sm:$0xff]
        %v504 = vld [vmem:[#allocation5 + $0x290] sm:$0xff]
        %v505 = vld [vmem:[#allocation5 + $0x298] sm:$0xff]
        %v506 = vld [vmem:[#allocation5 + $0x2a0] sm:$0xff]
        %v507 = vld [vmem:[#allocation5 + $0x2a8] sm:$0xff]
        %v508 = vld [vmem:[#allocation5 + $0x2b0] sm:$0xff]
        %v509 = vld [vmem:[#allocation5 + $0x2b8] sm:$0xff]
        %v510 = vld [vmem:[#allocation5 + $0x2c0] sm:$0xff]
        %v511 = vld [vmem:[#allocation5 + $0x2c8] sm:$0xff]
        %v512 = vld [vmem:[#allocation5 + $0x2d0] sm:$0xff]
        %v513 = vld [vmem:[#allocation5 + $0x2d8] sm:$0xff]
        %v514 = vld [vmem:[#allocation5 + $0x2e0] sm:$0xff]
        %v515 = vld [vmem:[#allocation5 + $0x2e8] sm:$0xff]
        %v516 = vld [vmem:[#allocation5 + $0x2f0] sm:$0xff]
        %v517 = vld [vmem:[#allocation5 + $0x2f8] sm:$0xff]
        %v518 = vld [vmem:[#allocation5 + $0x300] sm:$0xff]
        %v519 = vld [vmem:[#allocation5 + $0x308] sm:$0xff]
        %v520 = vld [vmem:[#allocation5 + $0x310] sm:$0xff]
        %v521 = vld [vmem:[#allocation5 + $0x318] sm:$0xff]
        %v522 = vld [vmem:[#allocation5 + $0x320] sm:$0xff]
        %v523 = vld [vmem:[#allocation5 + $0x328] sm:$0xff]
        %v524 = vld [vmem:[#allocation5 + $0x330] sm:$0xff]
        %v525 = vld [vmem:[#allocation5 + $0x338] sm:$0xff]
        %v526 = vld [vmem:[#allocation5 + $0x340] sm:$0xff]
        %v527 = vld [vmem:[#allocation5 + $0x348] sm:$0xff]
        %v528 = vld [vmem:[#allocation5 + $0x350] sm:$0xff]
        %v529 = vld [vmem:[#allocation5 + $0x358] sm:$0xff]
        %v530 = vld [vmem:[#allocation5 + $0x360] sm:$0xff]
        %v531 = vld [vmem:[#allocation5 + $0x368] sm:$0xff]
        %v532 = vld [vmem:[#allocation5 + $0x370] sm:$0xff]
        %v533 = vld [vmem:[#allocation5 + $0x378] sm:$0xff]
        %v534 = vld [vmem:[#allocation5 + $0x380] sm:$0xff]
        %v535 = vld [vmem:[#allocation5 + $0x388] sm:$0xff]
        %v536 = vld [vmem:[#allocation5 + $0x390] sm:$0xff]
        %v537 = vld [vmem:[#allocation5 + $0x398] sm:$0xff]
        %v538 = vld [vmem:[#allocation5 + $0x3a0] sm:$0xff]
        %v539 = vld [vmem:[#allocation5 + $0x3a8] sm:$0xff]
        %v540 = vld [vmem:[#allocation5 + $0x3b0] sm:$0xff]
        %v541 = vld [vmem:[#allocation5 + $0x3b8] sm:$0xff]
        %v542 = vld [vmem:[#allocation5 + $0x3c0] sm:$0xff]
        %v543 = vld [vmem:[#allocation5 + $0x3c8] sm:$0xff]
        %v544 = vld [vmem:[#allocation5 + $0x3d0] sm:$0xff]
        %v545 = vld [vmem:[#allocation5 + $0x3d8] sm:$0xff]
        %v546 = vld [vmem:[#allocation5 + $0x3e0] sm:$0xff]
        %v547 = vld [vmem:[#allocation5 + $0x3e8] sm:$0xff]
        %v548 = vld [vmem:[#allocation5 + $0x3f0] sm:$0xff]
        %v549 = vld [vmem:[#allocation5 + $0x3f8] sm:$0xff]
        %v550 = vld [vmem:[%s6] sm:$0xff]
        %v552 = vperm.slane %v550, 0
        %v553 = vperm.slane %v550, 1
        %v554 = vperm.slane %v550, 2
        %v555 = vperm.slane %v550, 3
        %v556 = vperm.slane %v550, 4
        %v557 = vperm.slane %v550, 5
        %v558 = vperm.slane %v550, 6
        %v559 = vperm.slane %v550, 7
        %568 = vmatpush.msra.mxu0 %v542
        %569 = vmatpush.msra.mxu0 %v534
        %570 = vmatpush.msra.mxu0 %v526
        %571 = vmatpush.msra.mxu0 %v518
        %572 = vmatpush.msra.mxu0 %v510
        %573 = vmatpush.msra.mxu0 %v502
        %574 = vmatpush.msra.mxu0 %v494
        %575 = vmatpush.msra.mxu0 %v486
        %576 = vmatpush.msra.mxu0 %v478
        %577 = vmatpush.msra.mxu0 %v470
        %578 = vmatpush.msra.mxu0 %v462
        %579 = vmatpush.msra.mxu0 %v454
        %580 = vmatpush.msra.mxu0 %v446
        %581 = vmatpush.msra.mxu0 %v438
        %582 = vmatpush.msra.mxu0 %v430
        %583 = vmatpush.msra.mxu0 %v422
        %584 = vmatmul.f32.gmra.mxu0 %v420
        %v585 = vpop.f32.mrf.mxu0
        %v586 = vadd.f32 %v552, %v585
        %587 = vmatmul.f32.gmra.mxu0 %v421
        %v588 = vpop.f32.mrf.mxu0
        %v589 = vadd.f32 %v552, %v588
        %590 = vdwg.mxu0
        %591 = vmatpush.msra.mxu0 %v543
        %592 = vmatpush.msra.mxu0 %v535
        %593 = vmatpush.msra.mxu0 %v527
        %594 = vmatpush.msra.mxu0 %v519
        %595 = vmatpush.msra.mxu0 %v511
        %596 = vmatpush.msra.mxu0 %v503
        %597 = vmatpush.msra.mxu0 %v495
        %598 = vmatpush.msra.mxu0 %v487
        %599 = vmatpush.msra.mxu0 %v479
        %600 = vmatpush.msra.mxu0 %v471
        %601 = vmatpush.msra.mxu0 %v463
        %602 = vmatpush.msra.mxu0 %v455
        %603 = vmatpush.msra.mxu0 %v447
        %604 = vmatpush.msra.mxu0 %v439
        %605 = vmatpush.msra.mxu0 %v431
        %606 = vmatpush.msra.mxu0 %v423
        %607 = vmatmul.f32.gmra.mxu0 %v420
        %v608 = vpop.f32.mrf.mxu0
        %v609 = vadd.f32 %v553, %v608
        %610 = vmatmul.f32.gmra.mxu0 %v421
        %v611 = vpop.f32.mrf.mxu0
        %v612 = vadd.f32 %v553, %v611
        %613 = vdwg.mxu0
        %614 = vmatpush.msra.mxu0 %v544
        %615 = vmatpush.msra.mxu0 %v536
        %616 = vmatpush.msra.mxu0 %v528
        %617 = vmatpush.msra.mxu0 %v520
        %618 = vmatpush.msra.mxu0 %v512
        %619 = vmatpush.msra.mxu0 %v504
        %620 = vmatpush.msra.mxu0 %v496
        %621 = vmatpush.msra.mxu0 %v488
        %622 = vmatpush.msra.mxu0 %v480
        %623 = vmatpush.msra.mxu0 %v472
        %624 = vmatpush.msra.mxu0 %v464
        %625 = vmatpush.msra.mxu0 %v456
        %626 = vmatpush.msra.mxu0 %v448
        %627 = vmatpush.msra.mxu0 %v440
        %628 = vmatpush.msra.mxu0 %v432
        %629 = vmatpush.msra.mxu0 %v424
        %630 = vmatmul.f32.gmra.mxu0 %v420
        %v631 = vpop.f32.mrf.mxu0
        %v632 = vadd.f32 %v554, %v631
        %633 = vmatmul.f32.gmra.mxu0 %v421
        %v634 = vpop.f32.mrf.mxu0
        %v635 = vadd.f32 %v554, %v634
        %636 = vdwg.mxu0
        %637 = vmatpush.msra.mxu0 %v545
        %638 = vmatpush.msra.mxu0 %v537
        %639 = vmatpush.msra.mxu0 %v529
        %640 = vmatpush.msra.mxu0 %v521
        %641 = vmatpush.msra.mxu0 %v513
        %642 = vmatpush.msra.mxu0 %v505
        %643 = vmatpush.msra.mxu0 %v497
        %644 = vmatpush.msra.mxu0 %v489
        %645 = vmatpush.msra.mxu0 %v481
        %646 = vmatpush.msra.mxu0 %v473
        %647 = vmatpush.msra.mxu0 %v465
        %648 = vmatpush.msra.mxu0 %v457
        %649 = vmatpush.msra.mxu0 %v449
        %650 = vmatpush.msra.mxu0 %v441
        %651 = vmatpush.msra.mxu0 %v433
        %652 = vmatpush.msra.mxu0 %v425
        %653 = vmatmul.f32.gmra.mxu0 %v420
        %v654 = vpop.f32.mrf.mxu0
        %v655 = vadd.f32 %v555, %v654
        %656 = vmatmul.f32.gmra.mxu0 %v421
        %v657 = vpop.f32.mrf.mxu0
        %v658 = vadd.f32 %v555, %v657
        %659 = vdwg.mxu0
        %660 = vmatpush.msra.mxu0 %v546
        %661 = vmatpush.msra.mxu0 %v538
        %662 = vmatpush.msra.mxu0 %v530
        %663 = vmatpush.msra.mxu0 %v522
        %664 = vmatpush.msra.mxu0 %v514
        %665 = vmatpush.msra.mxu0 %v506
        %666 = vmatpush.msra.mxu0 %v498
        %667 = vmatpush.msra.mxu0 %v490
        %668 = vmatpush.msra.mxu0 %v482
        %669 = vmatpush.msra.mxu0 %v474
        %670 = vmatpush.msra.mxu0 %v466
        %671 = vmatpush.msra.mxu0 %v458
        %672 = vmatpush.msra.mxu0 %v450
        %673 = vmatpush.msra.mxu0 %v442
        %674 = vmatpush.msra.mxu0 %v434
        %675 = vmatpush.msra.mxu0 %v426
        %676 = vmatmul.f32.gmra.mxu0 %v420
        %v677 = vpop.f32.mrf.mxu0
        %v678 = vadd.f32 %v556, %v677
        %679 = vmatmul.f32.gmra.mxu0 %v421
        %v680 = vpop.f32.mrf.mxu0
        %v681 = vadd.f32 %v556, %v680
        %682 = vdwg.mxu0
        %683 = vmatpush.msra.mxu0 %v547
        %684 = vmatpush.msra.mxu0 %v539
        %685 = vmatpush.msra.mxu0 %v531
        %686 = vmatpush.msra.mxu0 %v523
        %687 = vmatpush.msra.mxu0 %v515
        %688 = vmatpush.msra.mxu0 %v507
        %689 = vmatpush.msra.mxu0 %v499
        %690 = vmatpush.msra.mxu0 %v491
        %691 = vmatpush.msra.mxu0 %v483
        %692 = vmatpush.msra.mxu0 %v475
        %693 = vmatpush.msra.mxu0 %v467
        %694 = vmatpush.msra.mxu0 %v459
        %695 = vmatpush.msra.mxu0 %v451
        %696 = vmatpush.msra.mxu0 %v443
        %697 = vmatpush.msra.mxu0 %v435
        %698 = vmatpush.msra.mxu0 %v427
        %699 = vmatmul.f32.gmra.mxu0 %v420
        %v700 = vpop.f32.mrf.mxu0
        %v701 = vadd.f32 %v557, %v700
        %702 = vmatmul.f32.gmra.mxu0 %v421
        %v703 = vpop.f32.mrf.mxu0
        %v704 = vadd.f32 %v557, %v703
        %705 = vdwg.mxu0
        %706 = vmatpush.msra.mxu0 %v548
        %707 = vmatpush.msra.mxu0 %v540
        %708 = vmatpush.msra.mxu0 %v532
        %709 = vmatpush.msra.mxu0 %v524
        %710 = vmatpush.msra.mxu0 %v516
        %711 = vmatpush.msra.mxu0 %v508
        %712 = vmatpush.msra.mxu0 %v500
        %713 = vmatpush.msra.mxu0 %v492
        %714 = vmatpush.msra.mxu0 %v484
        %715 = vmatpush.msra.mxu0 %v476
        %716 = vmatpush.msra.mxu0 %v468
        %717 = vmatpush.msra.mxu0 %v460
        %718 = vmatpush.msra.mxu0 %v452
        %719 = vmatpush.msra.mxu0 %v444
        %720 = vmatpush.msra.mxu0 %v436
        %721 = vmatpush.msra.mxu0 %v428
        %722 = vmatmul.f32.gmra.mxu0 %v420
        %v723 = vpop.f32.mrf.mxu0
        %v724 = vadd.f32 %v558, %v723
        %725 = vmatmul.f32.gmra.mxu0 %v421
        %v726 = vpop.f32.mrf.mxu0
        %v727 = vadd.f32 %v558, %v726
        %728 = vdwg.mxu0
        %729 = vmatpush.msra.mxu0 %v549
        %730 = vmatpush.msra.mxu0 %v541
        %731 = vmatpush.msra.mxu0 %v533
        %732 = vmatpush.msra.mxu0 %v525
        %733 = vmatpush.msra.mxu0 %v517
        %734 = vmatpush.msra.mxu0 %v509
        %735 = vmatpush.msra.mxu0 %v501
        %736 = vmatpush.msra.mxu0 %v493
        %737 = vmatpush.msra.mxu0 %v485
        %738 = vmatpush.msra.mxu0 %v477
        %739 = vmatpush.msra.mxu0 %v469
        %740 = vmatpush.msra.mxu0 %v461
        %741 = vmatpush.msra.mxu0 %v453
        %742 = vmatpush.msra.mxu0 %v445
        %743 = vmatpush.msra.mxu0 %v437
        %744 = vmatpush.msra.mxu0 %v429
        %745 = vmatmul.f32.gmra.mxu0 %v420
        %v746 = vpop.f32.mrf.mxu0
        %v747 = vadd.f32 %v559, %v746
        %748 = vmatmul.f32.gmra.mxu0 %v421
        %v749 = vpop.f32.mrf.mxu0
        %v750 = vadd.f32 %v559, %v749
        %751 = vdwg.mxu0
        %v752 = vmax.f32 %v586, 0.0
        %v753 = vmax.f32 %v609, 0.0
        %v754 = vmax.f32 %v632, 0.0
        %v755 = vmax.f32 %v655, 0.0
        %v756 = vmax.f32 %v678, 0.0
        %v757 = vmax.f32 %v701, 0.0
        %v758 = vmax.f32 %v724, 0.0
        %v759 = vmax.f32 %v747, 0.0
        %v760 = vmax.f32 %v589, 0.0
        %v761 = vmax.f32 %v612, 0.0
        %v762 = vmax.f32 %v635, 0.0
        %v763 = vmax.f32 %v658, 0.0
        %v764 = vmax.f32 %v681, 0.0
        %v765 = vmax.f32 %v704, 0.0
        %v766 = vmax.f32 %v727, 0.0
        %v767 = vmax.f32 %v750, 0.0
        %v768 = vmax.f32 %v752, %v760
        %v769 = vrot.slane %v768, 4
        %v770 = vmax.f32 %v768, %v769
        %v771 = vrot.slane %v770, 2
        %v772 = vmax.f32 %v770, %v771
        %v773 = vrot.slane %v772, 1
        %v774 = vmax.f32 %v772, %v773
        %v775 = vmax.f32 %v753, %v761
        %v776 = vrot.slane %v775, 4
        %v777 = vmax.f32 %v775, %v776
        %v778 = vrot.slane %v777, 2
        %v779 = vmax.f32 %v777, %v778
        %v780 = vrot.slane %v779, 1
        %v781 = vmax.f32 %v779, %v780
        %v782 = vmax.f32 %v754, %v762
        %v783 = vrot.slane %v782, 4
        %v784 = vmax.f32 %v782, %v783
        %v785 = vrot.slane %v784, 2
        %v786 = vmax.f32 %v784, %v785
        %v787 = vrot.slane %v786, 1
        %v788 = vmax.f32 %v786, %v787
        %v789 = vmax.f32 %v755, %v763
        %v790 = vrot.slane %v789, 4
        %v791 = vmax.f32 %v789, %v790
        %v792 = vrot.slane %v791, 2
        %v793 = vmax.f32 %v791, %v792
        %v794 = vrot.slane %v793, 1
        %v795 = vmax.f32 %v793, %v794
        %v796 = vmax.f32 %v756, %v764
        %v797 = vrot.slane %v796, 4
        %v798 = vmax.f32 %v796, %v797
        %v799 = vrot.slane %v798, 2
        %v800 = vmax.f32 %v798, %v799
        %v801 = vrot.slane %v800, 1
        %v802 = vmax.f32 %v800, %v801
        %v803 = vmax.f32 %v757, %v765
        %v804 = vrot.slane %v803, 4
        %v805 = vmax.f32 %v803, %v804
        %v806 = vrot.slane %v805, 2
        %v807 = vmax.f32 %v805, %v806
        %v808 = vrot.slane %v807, 1
        %v809 = vmax.f32 %v807, %v808
        %v810 = vmax.f32 %v758, %v766
        %v811 = vrot.slane %v810, 4
        %v812 = vmax.f32 %v810, %v811
        %v813 = vrot.slane %v812, 2
        %v814 = vmax.f32 %v812, %v813
        %v815 = vrot.slane %v814, 1
        %v816 = vmax.f32 %v814, %v815
        %v817 = vmax.f32 %v759, %v767
        %v818 = vrot.slane %v817, 4
        %v819 = vmax.f32 %v817, %v818
        %v820 = vrot.slane %v819, 2
        %v821 = vmax.f32 %v819, %v820
        %v822 = vrot.slane %v821, 1
        %v823 = vmax.f32 %v821, %v822
        %p824 = scmp.eq.s32.totalorder %s28, 0
        // Predicated region
        $region57: #{tpu_custom_call.1} parent=47 // pred_check
          %p825 = pneg %p824
        $region58: #{tpu_custom_call.1} parent=47 // pred_check_branch
          %827 = sbr.rel (%p825) target = $region60
        $region59: #{tpu_custom_call.1} parent=47 // pred_region
          %828 = vst [vmem:[%s328] sm:$0xff] -inf
        $region60: #{tpu_custom_call.1} parent=47 // pred_fallthru
          _
        %v829 = vld [vmem:[%s328] sm:$0xff]
        %v838 = vrot.slane %v781, 7
        %v839 = vrot.slane %v788, 6
        %v840 = vrot.slane %v795, 5
        %v841 = vrot.slane %v802, 4
        %v842 = vrot.slane %v809, 3
        %v843 = vrot.slane %v816, 2
        %v844 = vrot.slane %v823, 1
        %vm845 = vcmask 1040384
        %v846 = vsel %vm845, %v774, %v838
        %vm847 = vcmask 1042434
        %v848 = vsel %vm847, %v839, %v840
        %vm849 = vcmask 1041408
        %v850 = vsel %vm849, %v846, %v848
        %vm851 = vcmask 1044484
        %v852 = vsel %vm851, %v841, %v842
        %vm853 = vcmask 1046534
        %v854 = vsel %vm853, %v843, %v844
        %vm855 = vcmask 1045508
        %v856 = vsel %vm855, %v852, %v854
        %vm857 = vcmask 1043456
        %v858 = vsel %vm857, %v850, %v856
        %v860 = vmax.f32 %v829, %v858
        %861 = vst [vmem:[%s328] sm:$0xff] %v860
        %s862 = sand.u32 %s197, 1
        %s863 = scalar_lea.sflag [#allocation4], %s862
        %s864 = sand.u32 %s197, 1
        %s865 = smul.addr %s864, 8
        %s866 = scalar_lea.vmem [#allocation7], %s865
        // Predicated region
        $region61: #{tpu_custom_call.1} parent=47 // pred_check
          %p867 = pneg %p207
        $region62: #{tpu_custom_call.1} parent=47 // pred_check_branch
          %869 = sbr.rel (%p867) target = $region64
        $region63: #{tpu_custom_call.1} parent=47 // pred_region
          %871 = vsyncadd %s863, 0
          %s872 = smul.addr %s27, 8
          %s873 = scalar_lea.hbm %s7, %s872
          %s875 = sshll.u32 %s866, 4
          %s876 = int_to_ptr.vmem [resolvable:$true] %s875
          %s877 = sshll.u32 %s873, 4
          %s878 = int_to_ptr.hbm [resolvable:$true] %s877
          %880 = dma.vmem_to_hbm [thread:$0]  %s876, 128, %s878, %s863
        $region64: #{tpu_custom_call.1} parent=47 // pred_fallthru
          _
      $region48: #{tpu_custom_call.1} parent=5 // pred_fallthru
        _
      %p881 = scmp.le.s32.totalorder 2, %s18
      // Predicated region
      $region65: #{tpu_custom_call.1} parent=5 // pred_check
        %p882 = pneg %p881
      $region66: #{tpu_custom_call.1} parent=5 // pred_check_branch
        %884 = sbr.rel (%p882) target = $region68
      $region67: #{tpu_custom_call.1} parent=5 // pred_region
        %s885 = ssub.s32 %s18, 2
        // Predicated region
        $region69: #{tpu_custom_call.1} parent=67 // pred_check
          %p886 = pneg %p213
        $region70: #{tpu_custom_call.1} parent=67 // pred_check_branch
          %888 = sbr.rel (%p886) target = $region72
        $region71: #{tpu_custom_call.1} parent=67 // pred_region
          %s889 = sand.u32 %s198, 1
          %s890 = scalar_lea.sflag [#allocation4], %s889
          %s891 = sand.u32 %s198, 1
          %s892 = smul.addr %s891, 8
          %s893 = scalar_lea.vmem [#allocation7], %s892
          %895 = dma.done %s890, 128
        $region72: #{tpu_custom_call.1} parent=67 // pred_fallthru
          _
      $region68: #{tpu_custom_call.1} parent=5 // pred_fallthru
        _
    $region6: #{tpu_custom_call.1} parent=1 // loop_footer
      %s22 = sadd.s32 1, %s18
    $region7: #{tpu_custom_call.1} parent=1 // loop_footer_branch
      %17 = sbr.rel target = $region3
    $region8: #{tpu_custom_call.1} parent=1 // loop_exit
      _
    %896 = vsyncpa [#allocation3], 1
    %s897 = scalar_lea.sflag [#allocation3], 1
    %898 = vsyncpa %s897, 1
    %899 = vsyncpa [#allocation6], 1
    %900 = vsyncpa [#allocation4], 1
    %s901 = scalar_lea.sflag [#allocation4], 1
    %902 = vsyncpa %s901, 1

</llo_original>
